<compile_context>
chip_gen: v7x
topology: tpu7x:2x2x1
jax: 0.10.0
libtpu: 0.0.40
codegen_flags: <defaults>
</compile_context>

<pallas_src>
import numpy as np
import jax
import jax.numpy as jnp
from jax import lax
from jax.experimental import pallas as pl
from jax.experimental.pallas import tpu as pltpu


def _round_up(x: int, m: int) -> int:
    return ((x + m - 1) // m) * m


# ---------------------------------------------------------------------------
# Path 1 — small/medium vocab: VMEM-resident table + one-hot MXU matmul.
# ---------------------------------------------------------------------------
def _onehot_gather_kernel(idx_ref, emb_ref, out_ref):
    """Gather one tile of rows with a one-hot matmul on the MXU.

    idx_ref : (tile, 1)  int32 — pre-offset row ids for this tile.
    emb_ref : (v_pad, E)       — full table, VMEM-resident (constant index_map).
    out_ref : (tile, E)        — gathered rows.
    """
    tile = idx_ref.shape[0]
    v_pad = emb_ref.shape[0]
    vocab_iota = lax.broadcasted_iota(jnp.int32, (tile, v_pad), 1)
    one_hot = (vocab_iota == idx_ref[...]).astype(emb_ref.dtype)
    # HIGHEST precision: f32 table rows pass through the MXU exactly (each
    # one-hot row selects a single table row; every other product is 0).
    out_ref[...] = jnp.dot(
        one_hot,
        emb_ref[...],
        preferred_element_type=jnp.float32,
        precision=lax.Precision.HIGHEST,
    ).astype(out_ref.dtype)


def _onehot_lookup(idx_flat, emb_table, *, tile, n_tiles):
    r_pad = tile * n_tiles
    v, e = emb_table.shape
    v_pad = _round_up(v, 128)                      # lane-align contraction dim
    if v_pad != v:
        emb_table = jnp.pad(emb_table, ((0, v_pad - v), (0, 0)))
    idx2d = idx_flat.reshape(r_pad, 1)
    itemsize = emb_table.dtype.itemsize

    cost = pl.CostEstimate(
        flops=2 * r_pad * v_pad * e,
        transcendentals=0,
        bytes_accessed=r_pad * 4 + v_pad * e * itemsize + r_pad * e * itemsize,
    )

    return pl.pallas_call(
        _onehot_gather_kernel,
        out_shape=jax.ShapeDtypeStruct((r_pad, e), emb_table.dtype),
        grid=(n_tiles,),
        in_specs=[
            pl.BlockSpec((tile, 1), lambda i: (i, 0)),      # index tile
            pl.BlockSpec((v_pad, e), lambda i: (0, 0)),     # resident table
        ],
        out_specs=pl.BlockSpec((tile, e), lambda i: (i, 0)),
        compiler_params=pltpu.CompilerParams(
            dimension_semantics=("parallel",)),             # 2 TCs on v7x
        cost_estimate=cost,
    )(idx2d, emb_table)


# ---------------------------------------------------------------------------
# Path 2 — large vocab: table stays in HBM, deep-prefetch manual DMA gather.
# ---------------------------------------------------------------------------
_N_INFLIGHT = 8        # power of two; random-row DMAs kept in flight per tile


def _dma_gather_kernel(idx_ref, emb_hbm, out_ref, row_buf, sems):
    """Gather one tile of rows from an HBM-resident table with deep prefetch.

    idx_ref : (r_pad,) int32 scalar-prefetch SMEM ref — pre-offset row ids.
    emb_hbm : (V, E) table left in HBM (memory_space=pl.ANY).
    out_ref : (tile, E) output block.
    row_buf : (tile, E) VMEM scratch the row DMAs land in.
    sems    : (_N_INFLIGHT,) DMA semaphores — rotating in-flight window.
    """
    tile = out_ref.shape[0]          # always a multiple of _N_INFLIGHT
    base = pl.program_id(0) * tile
    mask = _N_INFLIGHT - 1

    def issue(r):
        row = idx_ref[base + r]
        pltpu.make_async_copy(emb_hbm.at[pl.ds(row, 1), :],
                              row_buf.at[pl.ds(r, 1), :],
                              sems.at[r & mask]).start()

    def wait_slot(slot):
        # The wait only consumes the semaphore byte count; any single-row
        # descriptor of the same shape works.
        pltpu.make_async_copy(emb_hbm.at[pl.ds(0, 1), :],
                              row_buf.at[pl.ds(0, 1), :],
                              sems.at[slot]).wait()

    @pl.loop(0, _N_INFLIGHT)
    def _prime(r):
        issue(r)

    @pl.loop(_N_INFLIGHT, tile)
    def _steady(r):
        wait_slot(r & mask)          # row r - _N_INFLIGHT has landed
        issue(r)

    @pl.loop(0, _N_INFLIGHT)
    def _drain(slot):
        wait_slot(slot)

    out_ref[...] = row_buf[...]


def _dma_gather_lookup(idx_flat, emb_table, *, tile, n_tiles):
    r_pad = tile * n_tiles
    v, e = emb_table.shape
    itemsize = emb_table.dtype.itemsize
    assert tile % _N_INFLIGHT == 0

    cost = pl.CostEstimate(
        flops=0, transcendentals=0,
        bytes_accessed=r_pad * 4 + 2 * r_pad * e * itemsize)

    grid_spec = pltpu.PrefetchScalarGridSpec(
        num_scalar_prefetch=1,                          # flat indices -> SMEM
        grid=(n_tiles,),
        in_specs=[pl.BlockSpec(memory_space=pl.ANY)],   # table stays in HBM
        out_specs=pl.BlockSpec((tile, e), lambda i, idx: (i, 0)),
        scratch_shapes=[
            pltpu.VMEM((tile, e), emb_table.dtype),
            pltpu.SemaphoreType.DMA((_N_INFLIGHT,)),
        ],
    )
    return pl.pallas_call(
        _dma_gather_kernel,
        out_shape=jax.ShapeDtypeStruct((r_pad, e), emb_table.dtype),
        grid_spec=grid_spec,
        compiler_params=pltpu.CompilerParams(
            dimension_semantics=("arbitrary",)),
        cost_estimate=cost,
    )(idx_flat, emb_table)


# ---------------------------------------------------------------------------
# Public wrapper: FeaturesEmbedding.forward
# ---------------------------------------------------------------------------
def features_embedding(x, offsets, emb_table, *, tile_rows=256,
                       onehot_max_vocab=4096,
                       resident_table_bytes=8 * 1024 * 1024):
    """emb_table[(x + offsets[None, :])] -> (B, F, E), matching the module."""
    b, f = x.shape
    v, e = emb_table.shape

    # Pre-add offsets and flatten: one 1-D int32 index array for the kernels.
    idx_flat = (x.astype(jnp.int32)
                + offsets.astype(jnp.int32)[None, :]).reshape(-1)

    rows = b * f
    tile = _round_up(min(int(tile_rows), _round_up(rows, 8)), 8)
    r_pad = _round_up(rows, tile)
    n_tiles = r_pad // tile
    if r_pad != rows:
        # Padding rows gather table row 0 (always valid); sliced off below.
        idx_flat = jnp.pad(idx_flat, (0, r_pad - rows))

    table_bytes = _round_up(v, 128) * e * emb_table.dtype.itemsize
    if v <= onehot_max_vocab and table_bytes <= resident_table_bytes:
        # TODO(synk): a third option (resident table + in-kernel dynamic row
        # reads) could cover medium vocabs where the one-hot intermediate gets
        # too wide but the table still fits in VMEM.
        out_flat = _onehot_lookup(idx_flat, emb_table, tile=tile,
                                  n_tiles=n_tiles)
    else:
        out_flat = _dma_gather_lookup(idx_flat, emb_table, tile=tile,
                                      n_tiles=n_tiles)

    return out_flat[:rows].reshape(b, f, e)


# ---------------------------------------------------------------------------
# Demo / self-check
# ---------------------------------------------------------------------------
def _run_case(field_dims, embed_dim, batch, seed):
    num_fields = len(field_dims)
    vocab = int(sum(field_dims))

    key = jax.random.PRNGKey(seed)
    k_emb, k_x = jax.random.split(key)

    # torch.nn.init.xavier_normal_ on the (vocab, embed_dim) weight:
    # std = sqrt(2 / (fan_in + fan_out)).
    std = float(np.sqrt(2.0 / (vocab + embed_dim)))
    emb_table = std * jax.random.normal(k_emb, (vocab, embed_dim),
                                        dtype=jnp.float32)

    # offsets = (0, *cumsum(field_dims)[:-1]) — identical to the PyTorch module.
    offsets = jnp.asarray(np.array((0, *np.cumsum(field_dims)[:-1]),
                                   dtype=np.int32))

    # Raw per-field indices x[:, f] in [0, field_dims[f]).
    maxvals = jnp.asarray(field_dims, dtype=jnp.int32)[None, :]
    x = jax.random.randint(k_x, (batch, num_fields), 0, 2 ** 20,
                           dtype=jnp.int32) % maxvals

    out = features_embedding(x, offsets, emb_table)
    out = jax.block_until_ready(out)

    # Pure-JAX reference of the PyTorch forward: embedding(x + offsets).
    ref = emb_table[(x + offsets[None, :])]
    assert out.shape == (batch, num_fields, embed_dim)
    # The HIGHEST-precision one-hot matmul reproduces the gather exactly; the
    # tolerance only leaves slack for MXU f32 multi-pass rounding.
    np.testing.assert_allclose(np.asarray(out), np.asarray(ref),
                               rtol=1e-6, atol=1e-6)


if __name__ == "__main__":
    # Case 1: small deterministic config (batch * fields is already 8-aligned).
    _run_case(field_dims=(5, 7, 3, 9), embed_dim=16, batch=8, seed=0)
    # Case 2: exercises the row-padding path (21 rows -> 24-row tile).
    _run_case(field_dims=(11, 3, 6), embed_dim=32, batch=7, seed=0)
    print("KERNEL_OK")
</pallas_src>

<mosaic_0001>
module attributes {stable_mosaic.version = 11 : i64} {
  func.func @_onehot_gather_kernel(%arg0: i32, %arg1: memref<32x1xi32, #tpu.memory_space<vmem>>, %arg2: memref<128x16xf32, #tpu.memory_space<vmem>>, %arg3: memref<32x16xf32, #tpu.memory_space<vmem>>) attributes {dimension_semantics = [#tpu.dimension_semantics<parallel>], iteration_bounds = array<i64: 1>, scalar_prefetch = 0 : i64, scratch_operands = 0 : i64, tpu.core_type = #tpu.core_type<tc>, window_params = [{transform_indices = @transform_0, window_bounds = array<i64: 32, 1>}, {pipeline_mode = #tpu.pipeline_mode<synchronous>, transform_indices = @transform_1, window_bounds = array<i64: 128, 16>}, {transform_indices = @transform_2, window_bounds = array<i64: 32, 16>}]} {
    %0 = tpu.iota {dimensions = array<i32: 1>} : vector<32x128xi32>
    %c0 = arith.constant 0 : index
    %c0_0 = arith.constant 0 : index
    %1 = vector.load %arg1[%c0, %c0_0] : memref<32x1xi32, #tpu.memory_space<vmem>>, vector<32x1xi32>
    %2 = vector.broadcast %1 : vector<32x1xi32> to vector<32x128xi32>
    %3 = arith.cmpi eq, %0, %2 : vector<32x128xi32>
    %4 = arith.extui %3 : vector<32x128xi1> to vector<32x128xi32>
    %5 = arith.sitofp %4 : vector<32x128xi32> to vector<32x128xf32>
    %c0_1 = arith.constant 0 : index
    %c0_2 = arith.constant 0 : index
    %6 = vector.load %arg2[%c0_1, %c0_2] : memref<128x16xf32, #tpu.memory_space<vmem>>, vector<128x16xf32>
    %cst = arith.constant dense<0.000000e+00> : vector<32x16xf32>
    %7 = tpu.matmul %5, %6, %cst {dimension_numbers = #tpu.dot_dimension_numbers<[1], [0], [0], [1], [0, 0, 1, 1], [], []>, precision = #tpu.contract_precision<fp32>} : vector<32x128xf32>, vector<128x16xf32>, vector<32x16xf32> -> vector<32x16xf32>
    %c0_3 = arith.constant 0 : index
    %c0_4 = arith.constant 0 : index
    %8 = vector.load %arg3[%c0_3, %c0_4] : memref<32x16xf32, #tpu.memory_space<vmem>>, vector<32x16xf32>
    tpu.vector_store %arg3[%c0_3, %c0_4], %7 {strides = array<i32>} : memref<32x16xf32, #tpu.memory_space<vmem>>, vector<32x16xf32>,
    return
  }
  func.func @transform_0(%arg0: i32) -> (i32, i32) {
    %c0_i32 = arith.constant 0 : i32
    %c0_i32_0 = arith.constant 0 : i32
    return %arg0, %c0_i32 : i32, i32
  }
  func.func @transform_1(%arg0: i32) -> (i32, i32) {
    %c0_i32 = arith.constant 0 : i32
    %c0_i32_0 = arith.constant 0 : i32
    %c0_i32_1 = arith.constant 0 : i32
    return %c0_i32, %c0_i32_0 : i32, i32
  }
  func.func @transform_2(%arg0: i32) -> (i32, i32) {
    %c0_i32 = arith.constant 0 : i32
    %c0_i32_0 = arith.constant 0 : i32
    return %arg0, %c0_i32 : i32, i32
  }
}

</mosaic_0001>

<llo_original>
// kernel: tpu_custom_call.1
$region0: #{tpu_custom_call.1}
  #allocation0 [shape = 'u32[]', space=smem, size = 0x4, offset = 0x4, fixed_abs, tag = 'smem constant byte address 0x4 - core index']
  #allocation1 [shape = 'u32[144,128]{1,0:T(1,128)}', space=vmem, size = 0x12000, scoped, tag = 'internal scratch']
  %s0 = inlined_call_operand.vmem [shape: s32[32,1], index: 0, kind: input, shape index: {}]
  %s1 = inlined_call_operand.vmem [shape: f32[128,16], index: 1, kind: input, shape index: {}]
  %s2 = inlined_call_operand.vmem [shape: f32[32,16], index: 2, kind: output, shape index: {}]
  %s3 = sld [smem:[#allocation0]]
  $region18: #{tpu_custom_call.1} parent=0
    _
  %s5 = ssub.s32 1, %s3
  %s6 = scalar_select 0, %s5, %s3
  // Predicated region
  $region2: #{tpu_custom_call.1} parent=0 // pred_check
    _
  $region3: #{tpu_custom_call.1} parent=0 // pred_check_branch
    %8 = sbr.rel (0) target = $region5
  $region4: #{tpu_custom_call.1} parent=0 // pred_region
    _
  $region5: #{tpu_custom_call.1} parent=0 // pred_fallthru
    _
  // Predicated region
  $region6: #{tpu_custom_call.1} parent=0 // pred_check
    _
  $region7: #{tpu_custom_call.1} parent=0 // pred_check_branch
    %10 = sbr.rel (0) target = $region9
  $region8: #{tpu_custom_call.1} parent=0 // pred_region
    _
  $region9: #{tpu_custom_call.1} parent=0 // pred_fallthru
    _
  %v11 = vlaneseq
  %v12 = vand.u32 %v11, 127
  %v13 = vld [vmem:[%s0] sm:$0xff]
  %v14 = vld [vmem:[%s0 + $0x8] sm:$0xff]
  %v15 = vld [vmem:[%s0 + $0x10] sm:$0xff]
  %v16 = vld [vmem:[%s0 + $0x18] sm:$0xff]
  %17 = vset.pattern.permute.xlu0 0
  %18 = vperm.xlu0 %17, %v13
  %v19 = vpop.permute.xlu0 %18
  %20 = vset.pattern.permute.xlu0 0
  %21 = vperm.xlu0 %20, %v14
  %v22 = vpop.permute.xlu0 %21
  %23 = vset.pattern.permute.xlu0 0
  %24 = vperm.xlu0 %23, %v15
  %v25 = vpop.permute.xlu0 %24
  %26 = vset.pattern.permute.xlu0 0
  %27 = vperm.xlu0 %26, %v16
  %v28 = vpop.permute.xlu0 %27
  %vm29 = vcmp.eq.s32.totalorder %v12, %v19
  %vm30 = vcmp.eq.s32.totalorder %v12, %v22
  %vm31 = vcmp.eq.s32.totalorder %v12, %v25
  %vm32 = vcmp.eq.s32.totalorder %v12, %v28
  %v33 = vsel %vm29, 1, 0
  %v34 = vsel %vm30, 1, 0
  %v35 = vsel %vm31, 1, 0
  %v36 = vsel %vm32, 1, 0
  %v37 = vcvt.s32.f32 %v33
  %v38 = vcvt.s32.f32 %v34
  %v39 = vcvt.s32.f32 %v35
  %v40 = vcvt.s32.f32 %v36
  %v41 = vld [vmem:[%s1] sm:$0xff]
  %v42 = vld [vmem:[%s1 + $0x8] sm:$0xff]
  %v43 = vld [vmem:[%s1 + $0x10] sm:$0xff]
  %v44 = vld [vmem:[%s1 + $0x18] sm:$0xff]
  %v45 = vld [vmem:[%s1 + $0x20] sm:$0xff]
  %v46 = vld [vmem:[%s1 + $0x28] sm:$0xff]
  %v47 = vld [vmem:[%s1 + $0x30] sm:$0xff]
  %v48 = vld [vmem:[%s1 + $0x38] sm:$0xff]
  %v49 = vld [vmem:[%s1 + $0x40] sm:$0xff]
  %v50 = vld [vmem:[%s1 + $0x48] sm:$0xff]
  %v51 = vld [vmem:[%s1 + $0x50] sm:$0xff]
  %v52 = vld [vmem:[%s1 + $0x58] sm:$0xff]
  %v53 = vld [vmem:[%s1 + $0x60] sm:$0xff]
  %v54 = vld [vmem:[%s1 + $0x68] sm:$0xff]
  %v55 = vld [vmem:[%s1 + $0x70] sm:$0xff]
  %v56 = vld [vmem:[%s1 + $0x78] sm:$0xff]
  %57 = vmatprep.subr.mxu0 0.0
  %v58 = vand.u32 %v41, 4294901760
  %59 = vmatpush1.msra.mxu0 %v58
  %60 = vmatprep.subr.mxu0 0.0
  %v61 = vand.u32 %v42, 4294901760
  %62 = vmatpush1.msra.mxu0 %v61
  %63 = vmatprep.subr.mxu0 0.0
  %v64 = vand.u32 %v43, 4294901760
  %65 = vmatpush1.msra.mxu0 %v64
  %66 = vmatprep.subr.mxu0 0.0
  %v67 = vand.u32 %v44, 4294901760
  %68 = vmatpush1.msra.mxu0 %v67
  %69 = vmatprep.subr.mxu0 0.0
  %v70 = vand.u32 %v45, 4294901760
  %71 = vmatpush1.msra.mxu0 %v70
  %72 = vmatprep.subr.mxu0 0.0
  %v73 = vand.u32 %v46, 4294901760
  %74 = vmatpush1.msra.mxu0 %v73
  %75 = vmatprep.subr.mxu0 0.0
  %v76 = vand.u32 %v47, 4294901760
  %77 = vmatpush1.msra.mxu0 %v76
  %78 = vmatprep.subr.mxu0 0.0
  %v79 = vand.u32 %v48, 4294901760
  %80 = vmatpush1.msra.mxu0 %v79
  %81 = vmatprep.subr.mxu0 0.0
  %v82 = vand.u32 %v49, 4294901760
  %83 = vmatpush1.msra.mxu0 %v82
  %84 = vmatprep.subr.mxu0 0.0
  %v85 = vand.u32 %v50, 4294901760
  %86 = vmatpush1.msra.mxu0 %v85
  %87 = vmatprep.subr.mxu0 0.0
  %v88 = vand.u32 %v51, 4294901760
  %89 = vmatpush1.msra.mxu0 %v88
  %90 = vmatprep.subr.mxu0 0.0
  %v91 = vand.u32 %v52, 4294901760
  %92 = vmatpush1.msra.mxu0 %v91
  %93 = vmatprep.subr.mxu0 0.0
  %v94 = vand.u32 %v53, 4294901760
  %95 = vmatpush1.msra.mxu0 %v94
  %96 = vmatprep.subr.mxu0 0.0
  %v97 = vand.u32 %v54, 4294901760
  %98 = vmatpush1.msra.mxu0 %v97
  %99 = vmatprep.subr.mxu0 0.0
  %v100 = vand.u32 %v55, 4294901760
  %101 = vmatpush1.msra.mxu0 %v100
  %102 = vmatprep.subr.mxu0 0.0
  %v103 = vand.u32 %v56, 4294901760
  %104 = vmatpush1.msra.mxu0 %v103
  %105 = vmatprep.subr.mxu0 0.0
  %106 = vmatpush1.msra.mxu0 0.0
  %107 = vmatprep.subr.mxu0 0.0
  %108 = vmatpush1.msra.mxu0 0.0
  %109 = vmatprep.subr.mxu0 0.0
  %110 = vmatpush1.msra.mxu0 0.0
  %111 = vmatprep.subr.mxu0 0.0
  %112 = vmatpush1.msra.mxu0 0.0
  %113 = vmatprep.subr.mxu0 0.0
  %114 = vmatpush1.msra.mxu0 0.0
  %115 = vmatprep.subr.mxu0 0.0
  %116 = vmatpush1.msra.mxu0 0.0
  %117 = vmatprep.subr.mxu0 0.0
  %118 = vmatpush1.msra.mxu0 0.0
  %119 = vmatprep.subr.mxu0 0.0
  %120 = vmatpush1.msra.mxu0 0.0
  %121 = vmatprep.subr.mxu0 0.0
  %122 = vmatpush1.msra.mxu0 0.0
  %123 = vmatprep.subr.mxu0 0.0
  %124 = vmatpush1.msra.mxu0 0.0
  %125 = vmatprep.subr.mxu0 0.0
  %126 = vmatpush1.msra.mxu0 0.0
  %127 = vmatprep.subr.mxu0 0.0
  %128 = vmatpush1.msra.mxu0 0.0
  %129 = vmatprep.subr.mxu0 0.0
  %130 = vmatpush1.msra.mxu0 0.0
  %131 = vmatprep.subr.mxu0 0.0
  %132 = vmatpush1.msra.mxu0 0.0
  %133 = vmatprep.subr.mxu0 0.0
  %134 = vmatpush1.msra.mxu0 0.0
  %135 = vmatprep.subr.mxu0 0.0
  %136 = vmatpush1.msra.mxu0 0.0
  %137 = vmatprep.mubr.f32.mxu0 0.0
  %v138 = vand.u32 %v37, 4294901760
  %v139 = vsub.f32 %v37, %v138
  %v140 = vand.u32 %v139, 4294901760
  %v141 = vsub.f32 %v139, %v140
  %v142 = vand.u32 %v141, 4294901760
  %143 = vmatmul.mubr.f32.gmra.mrb[0].mxu0 %v142
  %v144 = vpop.f32.mrb[0].mxu0
  %v145 = vadd.f32 0.0, %v144
  %v146 = vpop.f32.mrb[0].mxu0
  %147 = vmatprep.mubr.f32.mxu0 0.0
  %v148 = vand.u32 %v38, 4294901760
  %v149 = vsub.f32 %v38, %v148
  %v150 = vand.u32 %v149, 4294901760
  %v151 = vsub.f32 %v149, %v150
  %v152 = vand.u32 %v151, 4294901760
  %153 = vmatmul.mubr.f32.gmra.mrb[0].mxu0 %v152
  %v154 = vpop.f32.mrb[0].mxu0
  %v155 = vadd.f32 0.0, %v154
  %v156 = vpop.f32.mrb[0].mxu0
  %157 = vmatprep.mubr.f32.mxu0 0.0
  %v158 = vand.u32 %v39, 4294901760
  %v159 = vsub.f32 %v39, %v158
  %v160 = vand.u32 %v159, 4294901760
  %v161 = vsub.f32 %v159, %v160
  %v162 = vand.u32 %v161, 4294901760
  %163 = vmatmul.mubr.f32.gmra.mrb[0].mxu0 %v162
  %v164 = vpop.f32.mrb[0].mxu0
  %v165 = vadd.f32 0.0, %v164
  %v166 = vpop.f32.mrb[0].mxu0
  %167 = vmatprep.mubr.f32.mxu0 0.0
  %v168 = vand.u32 %v40, 4294901760
  %v169 = vsub.f32 %v40, %v168
  %v170 = vand.u32 %v169, 4294901760
  %v171 = vsub.f32 %v169, %v170
  %v172 = vand.u32 %v171, 4294901760
  %173 = vmatmul.mubr.f32.gmra.mrb[0].mxu0 %v172
  %v174 = vpop.f32.mrb[0].mxu0
  %v175 = vadd.f32 0.0, %v174
  %v176 = vpop.f32.mrb[0].mxu0
  %177 = vdwg.mxu0
  %178 = vmatprep.subr.mxu0 0.0
  %v179 = vand.u32 %v41, 4294901760
  %v180 = vsub.f32 %v41, %v179
  %v181 = vand.u32 %v180, 4294901760
  %v182 = vsub.f32 %v180, %v181
  %v183 = vand.u32 %v182, 4294901760
  %184 = vmatpush1.msra.mxu0 %v183
  %185 = vmatprep.subr.mxu0 0.0
  %v186 = vand.u32 %v42, 4294901760
  %v187 = vsub.f32 %v42, %v186
  %v188 = vand.u32 %v187, 4294901760
  %v189 = vsub.f32 %v187, %v188
  %v190 = vand.u32 %v189, 4294901760
  %191 = vmatpush1.msra.mxu0 %v190
  %192 = vmatprep.subr.mxu0 0.0
  %v193 = vand.u32 %v43, 4294901760
  %v194 = vsub.f32 %v43, %v193
  %v195 = vand.u32 %v194, 4294901760
  %v196 = vsub.f32 %v194, %v195
  %v197 = vand.u32 %v196, 4294901760
  %198 = vmatpush1.msra.mxu0 %v197
  %199 = vmatprep.subr.mxu0 0.0
  %v200 = vand.u32 %v44, 4294901760
  %v201 = vsub.f32 %v44, %v200
  %v202 = vand.u32 %v201, 4294901760
  %v203 = vsub.f32 %v201, %v202
  %v204 = vand.u32 %v203, 4294901760
  %205 = vmatpush1.msra.mxu0 %v204
  %206 = vmatprep.subr.mxu0 0.0
  %v207 = vand.u32 %v45, 4294901760
  %v208 = vsub.f32 %v45, %v207
  %v209 = vand.u32 %v208, 4294901760
  %v210 = vsub.f32 %v208, %v209
  %v211 = vand.u32 %v210, 4294901760
  %212 = vmatpush1.msra.mxu0 %v211
  %213 = vmatprep.subr.mxu0 0.0
  %v214 = vand.u32 %v46, 4294901760
  %v215 = vsub.f32 %v46, %v214
  %v216 = vand.u32 %v215, 4294901760
  %v217 = vsub.f32 %v215, %v216
  %v218 = vand.u32 %v217, 4294901760
  %219 = vmatpush1.msra.mxu0 %v218
  %220 = vmatprep.subr.mxu0 0.0
  %v221 = vand.u32 %v47, 4294901760
  %v222 = vsub.f32 %v47, %v221
  %v223 = vand.u32 %v222, 4294901760
  %v224 = vsub.f32 %v222, %v223
  %v225 = vand.u32 %v224, 4294901760
  %226 = vmatpush1.msra.mxu0 %v225
  %227 = vmatprep.subr.mxu0 0.0
  %v228 = vand.u32 %v48, 4294901760
  %v229 = vsub.f32 %v48, %v228
  %v230 = vand.u32 %v229, 4294901760
  %v231 = vsub.f32 %v229, %v230
  %v232 = vand.u32 %v231, 4294901760
  %233 = vmatpush1.msra.mxu0 %v232
  %234 = vmatprep.subr.mxu0 0.0
  %v235 = vand.u32 %v49, 4294901760
  %v236 = vsub.f32 %v49, %v235
  %v237 = vand.u32 %v236, 4294901760
  %v238 = vsub.f32 %v236, %v237
  %v239 = vand.u32 %v238, 4294901760
  %240 = vmatpush1.msra.mxu0 %v239
  %241 = vmatprep.subr.mxu0 0.0
  %v242 = vand.u32 %v50, 4294901760
  %v243 = vsub.f32 %v50, %v242
  %v244 = vand.u32 %v243, 4294901760
  %v245 = vsub.f32 %v243, %v244
  %v246 = vand.u32 %v245, 4294901760
  %247 = vmatpush1.msra.mxu0 %v246
  %248 = vmatprep.subr.mxu0 0.0
  %v249 = vand.u32 %v51, 4294901760
  %v250 = vsub.f32 %v51, %v249
  %v251 = vand.u32 %v250, 4294901760
  %v252 = vsub.f32 %v250, %v251
  %v253 = vand.u32 %v252, 4294901760
  %254 = vmatpush1.msra.mxu0 %v253
  %255 = vmatprep.subr.mxu0 0.0
  %v256 = vand.u32 %v52, 4294901760
  %v257 = vsub.f32 %v52, %v256
  %v258 = vand.u32 %v257, 4294901760
  %v259 = vsub.f32 %v257, %v258
  %v260 = vand.u32 %v259, 4294901760
  %261 = vmatpush1.msra.mxu0 %v260
  %262 = vmatprep.subr.mxu0 0.0
  %v263 = vand.u32 %v53, 4294901760
  %v264 = vsub.f32 %v53, %v263
  %v265 = vand.u32 %v264, 4294901760
  %v266 = vsub.f32 %v264, %v265
  %v267 = vand.u32 %v266, 4294901760
  %268 = vmatpush1.msra.mxu0 %v267
  %269 = vmatprep.subr.mxu0 0.0
  %v270 = vand.u32 %v54, 4294901760
  %v271 = vsub.f32 %v54, %v270
  %v272 = vand.u32 %v271, 4294901760
  %v273 = vsub.f32 %v271, %v272
  %v274 = vand.u32 %v273, 4294901760
  %275 = vmatpush1.msra.mxu0 %v274
  %276 = vmatprep.subr.mxu0 0.0
  %v277 = vand.u32 %v55, 4294901760
  %v278 = vsub.f32 %v55, %v277
  %v279 = vand.u32 %v278, 4294901760
  %v280 = vsub.f32 %v278, %v279
  %v281 = vand.u32 %v280, 4294901760
  %282 = vmatpush1.msra.mxu0 %v281
  %283 = vmatprep.subr.mxu0 0.0
  %v284 = vand.u32 %v56, 4294901760
  %v285 = vsub.f32 %v56, %v284
  %v286 = vand.u32 %v285, 4294901760
  %v287 = vsub.f32 %v285, %v286
  %v288 = vand.u32 %v287, 4294901760
  %289 = vmatpush1.msra.mxu0 %v288
  %290 = vmatprep.subr.mxu0 0.0
  %291 = vmatpush1.msra.mxu0 0.0
  %292 = vmatprep.subr.mxu0 0.0
  %293 = vmatpush1.msra.mxu0 0.0
  %294 = vmatprep.subr.mxu0 0.0
  %295 = vmatpush1.msra.mxu0 0.0
  %296 = vmatprep.subr.mxu0 0.0
  %297 = vmatpush1.msra.mxu0 0.0
  %298 = vmatprep.subr.mxu0 0.0
  %299 = vmatpush1.msra.mxu0 0.0
  %300 = vmatprep.subr.mxu0 0.0
  %301 = vmatpush1.msra.mxu0 0.0
  %302 = vmatprep.subr.mxu0 0.0
  %303 = vmatpush1.msra.mxu0 0.0
  %304 = vmatprep.subr.mxu0 0.0
  %305 = vmatpush1.msra.mxu0 0.0
  %306 = vmatprep.subr.mxu0 0.0
  %307 = vmatpush1.msra.mxu0 0.0
  %308 = vmatprep.subr.mxu0 0.0
  %309 = vmatpush1.msra.mxu0 0.0
  %310 = vmatprep.subr.mxu0 0.0
  %311 = vmatpush1.msra.mxu0 0.0
  %312 = vmatprep.subr.mxu0 0.0
  %313 = vmatpush1.msra.mxu0 0.0
  %314 = vmatprep.subr.mxu0 0.0
  %315 = vmatpush1.msra.mxu0 0.0
  %316 = vmatprep.subr.mxu0 0.0
  %317 = vmatpush1.msra.mxu0 0.0
  %318 = vmatprep.subr.mxu0 0.0
  %319 = vmatpush1.msra.mxu0 0.0
  %320 = vmatprep.subr.mxu0 0.0
  %321 = vmatpush1.msra.mxu0 0.0
  %322 = vmatprep.mubr.f32.mxu0 0.0
  %v323 = vand.u32 %v37, 4294901760
  %324 = vmatmul.mubr.f32.gmra.mrb[0].mxu0 %v323
  %v325 = vpop.f32.mrb[0].mxu0
  %v326 = vadd.f32 %v145, %v325
  %v327 = vpop.f32.mrb[0].mxu0
  %328 = vmatprep.mubr.f32.mxu0 0.0
  %v329 = vand.u32 %v38, 4294901760
  %330 = vmatmul.mubr.f32.gmra.mrb[0].mxu0 %v329
  %v331 = vpop.f32.mrb[0].mxu0
  %v332 = vadd.f32 %v155, %v331
  %v333 = vpop.f32.mrb[0].mxu0
  %334 = vmatprep.mubr.f32.mxu0 0.0
  %v335 = vand.u32 %v39, 4294901760
  %336 = vmatmul.mubr.f32.gmra.mrb[0].mxu0 %v335
  %v337 = vpop.f32.mrb[0].mxu0
  %v338 = vadd.f32 %v165, %v337
  %v339 = vpop.f32.mrb[0].mxu0
  %340 = vmatprep.mubr.f32.mxu0 0.0
  %v341 = vand.u32 %v40, 4294901760
  %342 = vmatmul.mubr.f32.gmra.mrb[0].mxu0 %v341
  %v343 = vpop.f32.mrb[0].mxu0
  %v344 = vadd.f32 %v175, %v343
  %v345 = vpop.f32.mrb[0].mxu0
  %346 = vdwg.mxu0
  %347 = vmatprep.subr.mxu0 0.0
  %v348 = vand.u32 %v41, 4294901760
  %v349 = vsub.f32 %v41, %v348
  %350 = vmatpush1.msra.mxu0 %v349
  %351 = vmatprep.subr.mxu0 0.0
  %v352 = vand.u32 %v42, 4294901760
  %v353 = vsub.f32 %v42, %v352
  %354 = vmatpush1.msra.mxu0 %v353
  %355 = vmatprep.subr.mxu0 0.0
  %v356 = vand.u32 %v43, 4294901760
  %v357 = vsub.f32 %v43, %v356
  %358 = vmatpush1.msra.mxu0 %v357
  %359 = vmatprep.subr.mxu0 0.0
  %v360 = vand.u32 %v44, 4294901760
  %v361 = vsub.f32 %v44, %v360
  %362 = vmatpush1.msra.mxu0 %v361
  %363 = vmatprep.subr.mxu0 0.0
  %v364 = vand.u32 %v45, 4294901760
  %v365 = vsub.f32 %v45, %v364
  %366 = vmatpush1.msra.mxu0 %v365
  %367 = vmatprep.subr.mxu0 0.0
  %v368 = vand.u32 %v46, 4294901760
  %v369 = vsub.f32 %v46, %v368
  %370 = vmatpush1.msra.mxu0 %v369
  %371 = vmatprep.subr.mxu0 0.0
  %v372 = vand.u32 %v47, 4294901760
  %v373 = vsub.f32 %v47, %v372
  %374 = vmatpush1.msra.mxu0 %v373
  %375 = vmatprep.subr.mxu0 0.0
  %v376 = vand.u32 %v48, 4294901760
  %v377 = vsub.f32 %v48, %v376
  %378 = vmatpush1.msra.mxu0 %v377
  %379 = vmatprep.subr.mxu0 0.0
  %v380 = vand.u32 %v49, 4294901760
  %v381 = vsub.f32 %v49, %v380
  %382 = vmatpush1.msra.mxu0 %v381
  %383 = vmatprep.subr.mxu0 0.0
  %v384 = vand.u32 %v50, 4294901760
  %v385 = vsub.f32 %v50, %v384
  %386 = vmatpush1.msra.mxu0 %v385
  %387 = vmatprep.subr.mxu0 0.0
  %v388 = vand.u32 %v51, 4294901760
  %v389 = vsub.f32 %v51, %v388
  %390 = vmatpush1.msra.mxu0 %v389
  %391 = vmatprep.subr.mxu0 0.0
  %v392 = vand.u32 %v52, 4294901760
  %v393 = vsub.f32 %v52, %v392
  %394 = vmatpush1.msra.mxu0 %v393
  %395 = vmatprep.subr.mxu0 0.0
  %v396 = vand.u32 %v53, 4294901760
  %v397 = vsub.f32 %v53, %v396
  %398 = vmatpush1.msra.mxu0 %v397
  %399 = vmatprep.subr.mxu0 0.0
  %v400 = vand.u32 %v54, 4294901760
  %v401 = vsub.f32 %v54, %v400
  %402 = vmatpush1.msra.mxu0 %v401
  %403 = vmatprep.subr.mxu0 0.0
  %v404 = vand.u32 %v55, 4294901760
  %v405 = vsub.f32 %v55, %v404
  %406 = vmatpush1.msra.mxu0 %v405
  %407 = vmatprep.subr.mxu0 0.0
  %v408 = vand.u32 %v56, 4294901760
  %v409 = vsub.f32 %v56, %v408
  %410 = vmatpush1.msra.mxu0 %v409
  %411 = vmatprep.subr.mxu0 0.0
  %412 = vmatpush1.msra.mxu0 0.0
  %413 = vmatprep.subr.mxu0 0.0
  %414 = vmatpush1.msra.mxu0 0.0
  %415 = vmatprep.subr.mxu0 0.0
  %416 = vmatpush1.msra.mxu0 0.0
  %417 = vmatprep.subr.mxu0 0.0
  %418 = vmatpush1.msra.mxu0 0.0
  %419 = vmatprep.subr.mxu0 0.0
  %420 = vmatpush1.msra.mxu0 0.0
  %421 = vmatprep.subr.mxu0 0.0
  %422 = vmatpush1.msra.mxu0 0.0
  %423 = vmatprep.subr.mxu0 0.0
  %424 = vmatpush1.msra.mxu0 0.0
  %425 = vmatprep.subr.mxu0 0.0
  %426 = vmatpush1.msra.mxu0 0.0
  %427 = vmatprep.subr.mxu0 0.0
  %428 = vmatpush1.msra.mxu0 0.0
  %429 = vmatprep.subr.mxu0 0.0
  %430 = vmatpush1.msra.mxu0 0.0
  %431 = vmatprep.subr.mxu0 0.0
  %432 = vmatpush1.msra.mxu0 0.0
  %433 = vmatprep.subr.mxu0 0.0
  %434 = vmatpush1.msra.mxu0 0.0
  %435 = vmatprep.subr.mxu0 0.0
  %436 = vmatpush1.msra.mxu0 0.0
  %437 = vmatprep.subr.mxu0 0.0
  %438 = vmatpush1.msra.mxu0 0.0
  %439 = vmatprep.subr.mxu0 0.0
  %440 = vmatpush1.msra.mxu0 0.0
  %441 = vmatprep.subr.mxu0 0.0
  %442 = vmatpush1.msra.mxu0 0.0
  %443 = vmatprep.mubr.f32.mxu0 0.0
  %v444 = vand.u32 %v37, 4294901760
  %v445 = vsub.f32 %v37, %v444
  %446 = vmatmul.mubr.f32.gmra.mrb[0].mxu0 %v445
  %v447 = vpop.f32.mrb[0].mxu0
  %v448 = vadd.f32 %v326, %v447
  %v449 = vpop.f32.mrb[0].mxu0
  %450 = vmatprep.mubr.f32.mxu0 0.0
  %v451 = vand.u32 %v38, 4294901760
  %v452 = vsub.f32 %v38, %v451
  %453 = vmatmul.mubr.f32.gmra.mrb[0].mxu0 %v452
  %v454 = vpop.f32.mrb[0].mxu0
  %v455 = vadd.f32 %v332, %v454
  %v456 = vpop.f32.mrb[0].mxu0
  %457 = vmatprep.mubr.f32.mxu0 0.0
  %v458 = vand.u32 %v39, 4294901760
  %v459 = vsub.f32 %v39, %v458
  %460 = vmatmul.mubr.f32.gmra.mrb[0].mxu0 %v459
  %v461 = vpop.f32.mrb[0].mxu0
  %v462 = vadd.f32 %v338, %v461
  %v463 = vpop.f32.mrb[0].mxu0
  %464 = vmatprep.mubr.f32.mxu0 0.0
  %v465 = vand.u32 %v40, 4294901760
  %v466 = vsub.f32 %v40, %v465
  %467 = vmatmul.mubr.f32.gmra.mrb[0].mxu0 %v466
  %v468 = vpop.f32.mrb[0].mxu0
  %v469 = vadd.f32 %v344, %v468
  %v470 = vpop.f32.mrb[0].mxu0
  %471 = vdwg.mxu0
  %472 = vmatprep.subr.mxu0 0.0
  %v473 = vand.u32 %v41, 4294901760
  %474 = vmatpush1.msra.mxu0 %v473
  %475 = vmatprep.subr.mxu0 0.0
  %v476 = vand.u32 %v42, 4294901760
  %477 = vmatpush1.msra.mxu0 %v476
  %478 = vmatprep.subr.mxu0 0.0
  %v479 = vand.u32 %v43, 4294901760
  %480 = vmatpush1.msra.mxu0 %v479
  %481 = vmatprep.subr.mxu0 0.0
  %v482 = vand.u32 %v44, 4294901760
  %483 = vmatpush1.msra.mxu0 %v482
  %484 = vmatprep.subr.mxu0 0.0
  %v485 = vand.u32 %v45, 4294901760
  %486 = vmatpush1.msra.mxu0 %v485
  %487 = vmatprep.subr.mxu0 0.0
  %v488 = vand.u32 %v46, 4294901760
  %489 = vmatpush1.msra.mxu0 %v488
  %490 = vmatprep.subr.mxu0 0.0
  %v491 = vand.u32 %v47, 4294901760
  %492 = vmatpush1.msra.mxu0 %v491
  %493 = vmatprep.subr.mxu0 0.0
  %v494 = vand.u32 %v48, 4294901760
  %495 = vmatpush1.msra.mxu0 %v494
  %496 = vmatprep.subr.mxu0 0.0
  %v497 = vand.u32 %v49, 4294901760
  %498 = vmatpush1.msra.mxu0 %v497
  %499 = vmatprep.subr.mxu0 0.0
  %v500 = vand.u32 %v50, 4294901760
  %501 = vmatpush1.msra.mxu0 %v500
  %502 = vmatprep.subr.mxu0 0.0
  %v503 = vand.u32 %v51, 4294901760
  %504 = vmatpush1.msra.mxu0 %v503
  %505 = vmatprep.subr.mxu0 0.0
  %v506 = vand.u32 %v52, 4294901760
  %507 = vmatpush1.msra.mxu0 %v506
  %508 = vmatprep.subr.mxu0 0.0
  %v509 = vand.u32 %v53, 4294901760
  %510 = vmatpush1.msra.mxu0 %v509
  %511 = vmatprep.subr.mxu0 0.0
  %v512 = vand.u32 %v54, 4294901760
  %513 = vmatpush1.msra.mxu0 %v512
  %514 = vmatprep.subr.mxu0 0.0
  %v515 = vand.u32 %v55, 4294901760
  %516 = vmatpush1.msra.mxu0 %v515
  %517 = vmatprep.subr.mxu0 0.0
  %v518 = vand.u32 %v56, 4294901760
  %519 = vmatpush1.msra.mxu0 %v518
  %520 = vmatprep.subr.mxu0 0.0
  %521 = vmatpush1.msra.mxu0 0.0
  %522 = vmatprep.subr.mxu0 0.0
  %523 = vmatpush1.msra.mxu0 0.0
  %524 = vmatprep.subr.mxu0 0.0
  %525 = vmatpush1.msra.mxu0 0.0
  %526 = vmatprep.subr.mxu0 0.0
  %527 = vmatpush1.msra.mxu0 0.0
  %528 = vmatprep.subr.mxu0 0.0
  %529 = vmatpush1.msra.mxu0 0.0
  %530 = vmatprep.subr.mxu0 0.0
  %531 = vmatpush1.msra.mxu0 0.0
  %532 = vmatprep.subr.mxu0 0.0
  %533 = vmatpush1.msra.mxu0 0.0
  %534 = vmatprep.subr.mxu0 0.0
  %535 = vmatpush1.msra.mxu0 0.0
  %536 = vmatprep.subr.mxu0 0.0
  %537 = vmatpush1.msra.mxu0 0.0
  %538 = vmatprep.subr.mxu0 0.0
  %539 = vmatpush1.msra.mxu0 0.0
  %540 = vmatprep.subr.mxu0 0.0
  %541 = vmatpush1.msra.mxu0 0.0
  %542 = vmatprep.subr.mxu0 0.0
  %543 = vmatpush1.msra.mxu0 0.0
  %544 = vmatprep.subr.mxu0 0.0
  %545 = vmatpush1.msra.mxu0 0.0
  %546 = vmatprep.subr.mxu0 0.0
  %547 = vmatpush1.msra.mxu0 0.0
  %548 = vmatprep.subr.mxu0 0.0
  %549 = vmatpush1.msra.mxu0 0.0
  %550 = vmatprep.subr.mxu0 0.0
  %551 = vmatpush1.msra.mxu0 0.0
  %552 = vmatprep.mubr.f32.mxu0 0.0
  %v553 = vand.u32 %v37, 4294901760
  %v554 = vsub.f32 %v37, %v553
  %v555 = vand.u32 %v554, 4294901760
  %556 = vmatmul.mubr.f32.gmra.mrb[0].mxu0 %v555
  %v557 = vpop.f32.mrb[0].mxu0
  %v558 = vadd.f32 %v448, %v557
  %v559 = vpop.f32.mrb[0].mxu0
  %560 = vmatprep.mubr.f32.mxu0 0.0
  %v561 = vand.u32 %v38, 4294901760
  %v562 = vsub.f32 %v38, %v561
  %v563 = vand.u32 %v562, 4294901760
  %564 = vmatmul.mubr.f32.gmra.mrb[0].mxu0 %v563
  %v565 = vpop.f32.mrb[0].mxu0
  %v566 = vadd.f32 %v455, %v565
  %v567 = vpop.f32.mrb[0].mxu0
  %568 = vmatprep.mubr.f32.mxu0 0.0
  %v569 = vand.u32 %v39, 4294901760
  %v570 = vsub.f32 %v39, %v569
  %v571 = vand.u32 %v570, 4294901760
  %572 = vmatmul.mubr.f32.gmra.mrb[0].mxu0 %v571
  %v573 = vpop.f32.mrb[0].mxu0
  %v574 = vadd.f32 %v462, %v573
  %v575 = vpop.f32.mrb[0].mxu0
  %576 = vmatprep.mubr.f32.mxu0 0.0
  %v577 = vand.u32 %v40, 4294901760
  %v578 = vsub.f32 %v40, %v577
  %v579 = vand.u32 %v578, 4294901760
  %580 = vmatmul.mubr.f32.gmra.mrb[0].mxu0 %v579
  %v581 = vpop.f32.mrb[0].mxu0
  %v582 = vadd.f32 %v469, %v581
  %v583 = vpop.f32.mrb[0].mxu0
  %584 = vdwg.mxu0
  %585 = vmatprep.subr.mxu0 0.0
  %v586 = vand.u32 %v41, 4294901760
  %v587 = vsub.f32 %v41, %v586
  %v588 = vand.u32 %v587, 4294901760
  %589 = vmatpush1.msra.mxu0 %v588
  %590 = vmatprep.subr.mxu0 0.0
  %v591 = vand.u32 %v42, 4294901760
  %v592 = vsub.f32 %v42, %v591
  %v593 = vand.u32 %v592, 4294901760
  %594 = vmatpush1.msra.mxu0 %v593
  %595 = vmatprep.subr.mxu0 0.0
  %v596 = vand.u32 %v43, 4294901760
  %v597 = vsub.f32 %v43, %v596
  %v598 = vand.u32 %v597, 4294901760
  %599 = vmatpush1.msra.mxu0 %v598
  %600 = vmatprep.subr.mxu0 0.0
  %v601 = vand.u32 %v44, 4294901760
  %v602 = vsub.f32 %v44, %v601
  %v603 = vand.u32 %v602, 4294901760
  %604 = vmatpush1.msra.mxu0 %v603
  %605 = vmatprep.subr.mxu0 0.0
  %v606 = vand.u32 %v45, 4294901760
  %v607 = vsub.f32 %v45, %v606
  %v608 = vand.u32 %v607, 4294901760
  %609 = vmatpush1.msra.mxu0 %v608
  %610 = vmatprep.subr.mxu0 0.0
  %v611 = vand.u32 %v46, 4294901760
  %v612 = vsub.f32 %v46, %v611
  %v613 = vand.u32 %v612, 4294901760
  %614 = vmatpush1.msra.mxu0 %v613
  %615 = vmatprep.subr.mxu0 0.0
  %v616 = vand.u32 %v47, 4294901760
  %v617 = vsub.f32 %v47, %v616
  %v618 = vand.u32 %v617, 4294901760
  %619 = vmatpush1.msra.mxu0 %v618
  %620 = vmatprep.subr.mxu0 0.0
  %v621 = vand.u32 %v48, 4294901760
  %v622 = vsub.f32 %v48, %v621
  %v623 = vand.u32 %v622, 4294901760
  %624 = vmatpush1.msra.mxu0 %v623
  %625 = vmatprep.subr.mxu0 0.0
  %v626 = vand.u32 %v49, 4294901760
  %v627 = vsub.f32 %v49, %v626
  %v628 = vand.u32 %v627, 4294901760
  %629 = vmatpush1.msra.mxu0 %v628
  %630 = vmatprep.subr.mxu0 0.0
  %v631 = vand.u32 %v50, 4294901760
  %v632 = vsub.f32 %v50, %v631
  %v633 = vand.u32 %v632, 4294901760
  %634 = vmatpush1.msra.mxu0 %v633
  %635 = vmatprep.subr.mxu0 0.0
  %v636 = vand.u32 %v51, 4294901760
  %v637 = vsub.f32 %v51, %v636
  %v638 = vand.u32 %v637, 4294901760
  %639 = vmatpush1.msra.mxu0 %v638
  %640 = vmatprep.subr.mxu0 0.0
  %v641 = vand.u32 %v52, 4294901760
  %v642 = vsub.f32 %v52, %v641
  %v643 = vand.u32 %v642, 4294901760
  %644 = vmatpush1.msra.mxu0 %v643
  %645 = vmatprep.subr.mxu0 0.0
  %v646 = vand.u32 %v53, 4294901760
  %v647 = vsub.f32 %v53, %v646
  %v648 = vand.u32 %v647, 4294901760
  %649 = vmatpush1.msra.mxu0 %v648
  %650 = vmatprep.subr.mxu0 0.0
  %v651 = vand.u32 %v54, 4294901760
  %v652 = vsub.f32 %v54, %v651
  %v653 = vand.u32 %v652, 4294901760
  %654 = vmatpush1.msra.mxu0 %v653
  %655 = vmatprep.subr.mxu0 0.0
  %v656 = vand.u32 %v55, 4294901760
  %v657 = vsub.f32 %v55, %v656
  %v658 = vand.u32 %v657, 4294901760
  %659 = vmatpush1.msra.mxu0 %v658
  %660 = vmatprep.subr.mxu0 0.0
  %v661 = vand.u32 %v56, 4294901760
  %v662 = vsub.f32 %v56, %v661
  %v663 = vand.u32 %v662, 4294901760
  %664 = vmatpush1.msra.mxu0 %v663
  %665 = vmatprep.subr.mxu0 0.0
  %666 = vmatpush1.msra.mxu0 0.0
  %667 = vmatprep.subr.mxu0 0.0
  %668 = vmatpush1.msra.mxu0 0.0
  %669 = vmatprep.subr.mxu0 0.0
  %670 = vmatpush1.msra.mxu0 0.0
  %671 = vmatprep.subr.mxu0 0.0
  %672 = vmatpush1.msra.mxu0 0.0
  %673 = vmatprep.subr.mxu0 0.0
  %674 = vmatpush1.msra.mxu0 0.0
  %675 = vmatprep.subr.mxu0 0.0
  %676 = vmatpush1.msra.mxu0 0.0
  %677 = vmatprep.subr.mxu0 0.0
  %678 = vmatpush1.msra.mxu0 0.0
  %679 = vmatprep.subr.mxu0 0.0
  %680 = vmatpush1.msra.mxu0 0.0
  %681 = vmatprep.subr.mxu0 0.0
  %682 = vmatpush1.msra.mxu0 0.0
  %683 = vmatprep.subr.mxu0 0.0
  %684 = vmatpush1.msra.mxu0 0.0
  %685 = vmatprep.subr.mxu0 0.0
  %686 = vmatpush1.msra.mxu0 0.0
  %687 = vmatprep.subr.mxu0 0.0
  %688 = vmatpush1.msra.mxu0 0.0
  %689 = vmatprep.subr.mxu0 0.0
  %690 = vmatpush1.msra.mxu0 0.0
  %691 = vmatprep.subr.mxu0 0.0
  %692 = vmatpush1.msra.mxu0 0.0
  %693 = vmatprep.subr.mxu0 0.0
  %694 = vmatpush1.msra.mxu0 0.0
  %695 = vmatprep.subr.mxu0 0.0
  %696 = vmatpush1.msra.mxu0 0.0
  %697 = vmatprep.mubr.f32.mxu0 0.0
  %v698 = vand.u32 %v37, 4294901760
  %699 = vmatmul.mubr.f32.gmra.mrb[0].mxu0 %v698
  %v700 = vpop.f32.mrb[0].mxu0
  %v701 = vadd.f32 %v558, %v700
  %v702 = vpop.f32.mrb[0].mxu0
  %703 = vmatprep.mubr.f32.mxu0 0.0
  %v704 = vand.u32 %v38, 4294901760
  %705 = vmatmul.mubr.f32.gmra.mrb[0].mxu0 %v704
  %v706 = vpop.f32.mrb[0].mxu0
  %v707 = vadd.f32 %v566, %v706
  %v708 = vpop.f32.mrb[0].mxu0
  %709 = vmatprep.mubr.f32.mxu0 0.0
  %v710 = vand.u32 %v39, 4294901760
  %711 = vmatmul.mubr.f32.gmra.mrb[0].mxu0 %v710
  %v712 = vpop.f32.mrb[0].mxu0
  %v713 = vadd.f32 %v574, %v712
  %v714 = vpop.f32.mrb[0].mxu0
  %715 = vmatprep.mubr.f32.mxu0 0.0
  %v716 = vand.u32 %v40, 4294901760
  %717 = vmatmul.mubr.f32.gmra.mrb[0].mxu0 %v716
  %v718 = vpop.f32.mrb[0].mxu0
  %v719 = vadd.f32 %v582, %v718
  %v720 = vpop.f32.mrb[0].mxu0
  %721 = vdwg.mxu0
  %722 = vmatprep.subr.mxu0 0.0
  %v723 = vand.u32 %v41, 4294901760
  %724 = vmatpush1.msra.mxu0 %v723
  %725 = vmatprep.subr.mxu0 0.0
  %v726 = vand.u32 %v42, 4294901760
  %727 = vmatpush1.msra.mxu0 %v726
  %728 = vmatprep.subr.mxu0 0.0
  %v729 = vand.u32 %v43, 4294901760
  %730 = vmatpush1.msra.mxu0 %v729
  %731 = vmatprep.subr.mxu0 0.0
  %v732 = vand.u32 %v44, 4294901760
  %733 = vmatpush1.msra.mxu0 %v732
  %734 = vmatprep.subr.mxu0 0.0
  %v735 = vand.u32 %v45, 4294901760
  %736 = vmatpush1.msra.mxu0 %v735
  %737 = vmatprep.subr.mxu0 0.0
  %v738 = vand.u32 %v46, 4294901760
  %739 = vmatpush1.msra.mxu0 %v738
  %740 = vmatprep.subr.mxu0 0.0
  %v741 = vand.u32 %v47, 4294901760
  %742 = vmatpush1.msra.mxu0 %v741
  %743 = vmatprep.subr.mxu0 0.0
  %v744 = vand.u32 %v48, 4294901760
  %745 = vmatpush1.msra.mxu0 %v744
  %746 = vmatprep.subr.mxu0 0.0
  %v747 = vand.u32 %v49, 4294901760
  %748 = vmatpush1.msra.mxu0 %v747
  %749 = vmatprep.subr.mxu0 0.0
  %v750 = vand.u32 %v50, 4294901760
  %751 = vmatpush1.msra.mxu0 %v750
  %752 = vmatprep.subr.mxu0 0.0
  %v753 = vand.u32 %v51, 4294901760
  %754 = vmatpush1.msra.mxu0 %v753
  %755 = vmatprep.subr.mxu0 0.0
  %v756 = vand.u32 %v52, 4294901760
  %757 = vmatpush1.msra.mxu0 %v756
  %758 = vmatprep.subr.mxu0 0.0
  %v759 = vand.u32 %v53, 4294901760
  %760 = vmatpush1.msra.mxu0 %v759
  %761 = vmatprep.subr.mxu0 0.0
  %v762 = vand.u32 %v54, 4294901760
  %763 = vmatpush1.msra.mxu0 %v762
  %764 = vmatprep.subr.mxu0 0.0
  %v765 = vand.u32 %v55, 4294901760
  %766 = vmatpush1.msra.mxu0 %v765
  %767 = vmatprep.subr.mxu0 0.0
  %v768 = vand.u32 %v56, 4294901760
  %769 = vmatpush1.msra.mxu0 %v768
  %770 = vmatprep.subr.mxu0 0.0
  %771 = vmatpush1.msra.mxu0 0.0
  %772 = vmatprep.subr.mxu0 0.0
  %773 = vmatpush1.msra.mxu0 0.0
  %774 = vmatprep.subr.mxu0 0.0
  %775 = vmatpush1.msra.mxu0 0.0
  %776 = vmatprep.subr.mxu0 0.0
  %777 = vmatpush1.msra.mxu0 0.0
  %778 = vmatprep.subr.mxu0 0.0
  %779 = vmatpush1.msra.mxu0 0.0
  %780 = vmatprep.subr.mxu0 0.0
  %781 = vmatpush1.msra.mxu0 0.0
  %782 = vmatprep.subr.mxu0 0.0
  %783 = vmatpush1.msra.mxu0 0.0
  %784 = vmatprep.subr.mxu0 0.0
  %785 = vmatpush1.msra.mxu0 0.0
  %786 = vmatprep.subr.mxu0 0.0
  %787 = vmatpush1.msra.mxu0 0.0
  %788 = vmatprep.subr.mxu0 0.0
  %789 = vmatpush1.msra.mxu0 0.0
  %790 = vmatprep.subr.mxu0 0.0
  %791 = vmatpush1.msra.mxu0 0.0
  %792 = vmatprep.subr.mxu0 0.0
  %793 = vmatpush1.msra.mxu0 0.0
  %794 = vmatprep.subr.mxu0 0.0
  %795 = vmatpush1.msra.mxu0 0.0
  %796 = vmatprep.subr.mxu0 0.0
  %797 = vmatpush1.msra.mxu0 0.0
  %798 = vmatprep.subr.mxu0 0.0
  %799 = vmatpush1.msra.mxu0 0.0
  %800 = vmatprep.subr.mxu0 0.0
  %801 = vmatpush1.msra.mxu0 0.0
  %802 = vmatprep.mubr.f32.mxu0 0.0
  %v803 = vand.u32 %v37, 4294901760
  %804 = vmatmul.mubr.f32.gmra.mrb[0].mxu0 %v803
  %v805 = vpop.f32.mrb[0].mxu0
  %v806 = vadd.f32 %v701, %v805
  %v807 = vpop.f32.mrb[0].mxu0
  %808 = vmatprep.mubr.f32.mxu0 0.0
  %v809 = vand.u32 %v38, 4294901760
  %810 = vmatmul.mubr.f32.gmra.mrb[0].mxu0 %v809
  %v811 = vpop.f32.mrb[0].mxu0
  %v812 = vadd.f32 %v707, %v811
  %v813 = vpop.f32.mrb[0].mxu0
  %814 = vmatprep.mubr.f32.mxu0 0.0
  %v815 = vand.u32 %v39, 4294901760
  %816 = vmatmul.mubr.f32.gmra.mrb[0].mxu0 %v815
  %v817 = vpop.f32.mrb[0].mxu0
  %v818 = vadd.f32 %v713, %v817
  %v819 = vpop.f32.mrb[0].mxu0
  %820 = vmatprep.mubr.f32.mxu0 0.0
  %v821 = vand.u32 %v40, 4294901760
  %822 = vmatmul.mubr.f32.gmra.mrb[0].mxu0 %v821
  %v823 = vpop.f32.mrb[0].mxu0
  %v824 = vadd.f32 %v719, %v823
  %v825 = vpop.f32.mrb[0].mxu0
  %826 = vdwg.mxu0
  %vm827 = vcmask 130048
  %828 = vst.msk [vmem:[%s2] sm:$0xff] %vm827, %v806
  %829 = vst.msk [vmem:[%s2 + $0x8] sm:$0xff] %vm827, %v812
  %830 = vst.msk [vmem:[%s2 + $0x10] sm:$0xff] %vm827, %v818
  %831 = vst.msk [vmem:[%s2 + $0x18] sm:$0xff] %vm827, %v824
  // Predicated region
  $region10: #{tpu_custom_call.1} parent=0 // pred_check
    _
  $region11: #{tpu_custom_call.1} parent=0 // pred_check_branch
    %833 = sbr.rel (0) target = $region13
  $region12: #{tpu_custom_call.1} parent=0 // pred_region
    _
  $region13: #{tpu_custom_call.1} parent=0 // pred_fallthru
    _
  // Predicated region
  $region14: #{tpu_custom_call.1} parent=0 // pred_check
    _
  $region15: #{tpu_custom_call.1} parent=0 // pred_check_branch
    %835 = sbr.rel (0) target = $region17
  $region16: #{tpu_custom_call.1} parent=0 // pred_region
    _
  $region17: #{tpu_custom_call.1} parent=0 // pred_fallthru
    _

</llo_original>
